<compile_context>
chip_gen: v5e
topology: v5e:2x2
jax: 0.10.0
libtpu: 0.0.40
codegen_flags: <defaults>
</compile_context>

<pallas_src>
import functools

import jax
import jax.numpy as jnp
from jax.experimental import pallas as pl
from jax.experimental.pallas import tpu as pltpu

LANE = 1024          # lane-dense last dim (multiple of 128) -> big contiguous DMAs
ROW_ALIGN = 32       # covers f32 (8), bf16 (16), int8/fp8 (32) sublane packing
MAX_TILE_ROWS = 256  # 256 * 1024 * 4 B = 1 MiB per f32 input block


def _bce_kernel(x_ref, t_ref, o_ref, acc_ref, *, inv_n):
    """One (TILE_ROWS, LANE) tile of clamped-log BCE, accumulated into SMEM."""
    i = pl.program_id(0)

    @pl.when(i == 0)
    def _():
        acc_ref[0] = jnp.float32(0.0)

    p = x_ref[...].astype(jnp.float32)
    t = t_ref[...].astype(jnp.float32)

    # PyTorch clamps log(p) and log(1 - p) at -100 to avoid -inf.
    log_p = jnp.maximum(jnp.log(p), -100.0)
    log_1mp = jnp.maximum(jnp.log(1.0 - p), -100.0)
    loss = -(t * log_p + (1.0 - t) * log_1mp)

    # Padding elements were filled with (p=1, t=1) -> loss is exactly 0,
    # so no mask is needed.
    acc_ref[0] += jnp.sum(loss)

    @pl.when(i == pl.num_programs(0) - 1)
    def _():
        o_ref[0, 0] = acc_ref[0] * jnp.float32(inv_n)


def bce_loss(inputs, targets):
    """Pallas equivalent of BCELoss.forward(inputs, targets) (mean reduction)."""
    x = inputs.reshape(-1)      # keep native dtype; cast happens in-kernel
    t = targets.reshape(-1)
    n = x.shape[0]

    # Choose a lane-dense (rows, LANE) layout and a row-tile size.
    rows = -(-n // LANE)
    rows = ((rows + ROW_ALIGN - 1) // ROW_ALIGN) * ROW_ALIGN
    tile_rows = min(MAX_TILE_ROWS, rows)
    num_tiles = -(-rows // tile_rows)
    rows = num_tiles * tile_rows
    padded_n = rows * LANE

    pad = padded_n - n
    if pad:
        # Pad with (x=1, t=1): clamped-log BCE of such an element is exactly 0.
        x = jnp.pad(x, (0, pad), constant_values=1)
        t = jnp.pad(t, (0, pad), constant_values=1)
    x2 = x.reshape(rows, LANE)
    t2 = t.reshape(rows, LANE)

    out = pl.pallas_call(
        functools.partial(_bce_kernel, inv_n=1.0 / float(n)),
        out_shape=jax.ShapeDtypeStruct((1, 1), jnp.float32),
        grid_spec=pltpu.PrefetchScalarGridSpec(
            num_scalar_prefetch=0,
            grid=(num_tiles,),
            in_specs=[
                pl.BlockSpec((tile_rows, LANE), lambda i: (i, 0)),
                pl.BlockSpec((tile_rows, LANE), lambda i: (i, 0)),
            ],
            out_specs=pl.BlockSpec(memory_space=pltpu.SMEM),
            scratch_shapes=[pltpu.SMEM((1,), jnp.float32)],
        ),
        compiler_params=pltpu.CompilerParams(
            dimension_semantics=("arbitrary",),
        ),
    )(x2, t2)
    return out[0, 0]


if __name__ == "__main__":
    key = jax.random.PRNGKey(0)
    k1, k2 = jax.random.split(key)

    # Small shapes consistent with a segmentation-style BCE usage: NCHW.
    shape = (2, 4, 16, 16)
    # Inputs are probabilities in (0, 1); targets are binary labels as floats.
    inputs = jax.nn.sigmoid(jax.random.normal(k1, shape, dtype=jnp.float32))
    targets = jax.random.bernoulli(k2, p=0.5, shape=shape).astype(jnp.float32)

    loss = bce_loss(inputs, targets)
    jax.block_until_ready(loss)

    # Reference check in plain JAX (same clamped-log semantics as PyTorch).
    p = inputs.reshape(-1)
    t = targets.reshape(-1)
    ref = jnp.mean(
        -(t * jnp.maximum(jnp.log(p), -100.0)
          + (1.0 - t) * jnp.maximum(jnp.log(1.0 - p), -100.0))
    )
    assert jnp.allclose(loss, ref, atol=1e-5, rtol=1e-5), (loss, ref)

    print("KERNEL_OK")
</pallas_src>

<mosaic_0001>
module attributes {stable_mosaic.version = 11 : i64} {
  func.func @_bce_kernel(%arg0: i32, %arg1: memref<32x1024xf32, #tpu.memory_space<vmem>>, %arg2: memref<32x1024xf32, #tpu.memory_space<vmem>>, %arg3: memref<1x1xf32, #tpu.memory_space<smem>>, %arg4: memref<1xf32, #tpu.memory_space<smem>>) attributes {dimension_semantics = [#tpu.dimension_semantics<arbitrary>], iteration_bounds = array<i64: 1>, scalar_prefetch = 0 : i64, scratch_operands = 1 : i64, tpu.core_type = #tpu.core_type<tc>, window_params = [{transform_indices = @transform_0, window_bounds = array<i64: 32, 1024>}, {transform_indices = @transform_1, window_bounds = array<i64: 32, 1024>}, {transform_indices = @transform_2, window_bounds = array<i64: 1, 1>}]} {
    %c0_i32 = arith.constant 0 : i32
    %0 = arith.cmpi eq, %arg0, %c0_i32 : i32
    %1 = arith.extui %0 : i1 to i32
    %c0_i32_0 = arith.constant 0 : i32
    %2 = arith.cmpi ne, %1, %c0_i32_0 : i32
    scf.if %2 {
      %cst_13 = arith.constant 0.000000e+00 : f32
      %c0_14 = arith.constant 0 : index
      %30 = memref.load %arg4[%c0_14] : memref<1xf32, #tpu.memory_space<smem>>
      memref.store %cst_13, %arg4[%c0_14] : memref<1xf32, #tpu.memory_space<smem>>
    } else {
    }
    %c0 = arith.constant 0 : index
    %c0_1 = arith.constant 0 : index
    %3 = vector.load %arg1[%c0, %c0_1] : memref<32x1024xf32, #tpu.memory_space<vmem>>, vector<32x1024xf32>
    %c0_2 = arith.constant 0 : index
    %c0_3 = arith.constant 0 : index
    %4 = vector.load %arg2[%c0_2, %c0_3] : memref<32x1024xf32, #tpu.memory_space<vmem>>, vector<32x1024xf32>
    %5 = math.log %3 : vector<32x1024xf32>
    %cst = arith.constant -1.000000e+02 : f32
    %6 = vector.broadcast %cst : f32 to vector<32x1024xf32>
    %7 = arith.maximumf %5, %6 : vector<32x1024xf32>
    %cst_4 = arith.constant 1.000000e+00 : f32
    %8 = vector.broadcast %cst_4 : f32 to vector<32x1024xf32>
    %9 = arith.subf %8, %3 : vector<32x1024xf32>
    %10 = math.log %9 : vector<32x1024xf32>
    %cst_5 = arith.constant -1.000000e+02 : f32
    %11 = vector.broadcast %cst_5 : f32 to vector<32x1024xf32>
    %12 = arith.maximumf %10, %11 : vector<32x1024xf32>
    %13 = arith.mulf %4, %7 : vector<32x1024xf32>
    %cst_6 = arith.constant 1.000000e+00 : f32
    %14 = vector.broadcast %cst_6 : f32 to vector<32x1024xf32>
    %15 = arith.subf %14, %4 : vector<32x1024xf32>
    %16 = arith.mulf %15, %12 : vector<32x1024xf32>
    %17 = arith.addf %13, %16 : vector<32x1024xf32>
    %cst_7 = arith.constant 0.000000e+00 : f32
    %18 = vector.broadcast %cst_7 : f32 to vector<32x1024xf32>
    %19 = arith.subf %18, %17 : vector<32x1024xf32>
    %c0_8 = arith.constant 0 : index
    %20 = memref.load %arg4[%c0_8] : memref<1xf32, #tpu.memory_space<smem>>
    %21 = vector.shape_cast %19 : vector<32x1024xf32> to vector<1x32x1024xf32>
    %cst_9 = arith.constant dense<0.000000e+00> : vector<1xf32>
    %22 = vector.multi_reduction <add>, %21, %cst_9 [1, 2] : vector<1x32x1024xf32> to vector<1xf32>
    %23 = vector.shape_cast %22 : vector<1xf32> to vector<1x1x1xf32>
    %24 = vector.extract %23[0, 0, 0] : f32 from vector<1x1x1xf32>
    %25 = arith.addf %20, %24 : f32
    %c0_10 = arith.constant 0 : index
    %26 = memref.load %arg4[%c0_10] : memref<1xf32, #tpu.memory_space<smem>>
    memref.store %25, %arg4[%c0_10] : memref<1xf32, #tpu.memory_space<smem>>
    %c0_i32_11 = arith.constant 0 : i32
    %27 = arith.cmpi eq, %arg0, %c0_i32_11 : i32
    %28 = arith.extui %27 : i1 to i32
    %c0_i32_12 = arith.constant 0 : i32
    %29 = arith.cmpi ne, %28, %c0_i32_12 : i32
    scf.if %29 {
      %c0_13 = arith.constant 0 : index
      %30 = memref.load %arg4[%c0_13] : memref<1xf32, #tpu.memory_space<smem>>
      %cst_14 = arith.constant 4.8828125E-4 : f32
      %31 = arith.mulf %30, %cst_14 : f32
      %c0_15 = arith.constant 0 : index
      %c0_16 = arith.constant 0 : index
      %32 = memref.load %arg3[%c0_15, %c0_16] : memref<1x1xf32, #tpu.memory_space<smem>>
      memref.store %31, %arg3[%c0_15, %c0_16] : memref<1x1xf32, #tpu.memory_space<smem>>
    } else {
    }
    return
  }
  func.func @transform_0(%arg0: i32) -> (i32, i32) {
    %c0_i32 = arith.constant 0 : i32
    %c0_i32_0 = arith.constant 0 : i32
    return %arg0, %c0_i32 : i32, i32
  }
  func.func @transform_1(%arg0: i32) -> (i32, i32) {
    %c0_i32 = arith.constant 0 : i32
    %c0_i32_0 = arith.constant 0 : i32
    return %arg0, %c0_i32 : i32, i32
  }
  func.func @transform_2(%arg0: i32) -> (i32, i32) {
    %c0_i32 = arith.constant 0 : i32
    %c0_i32_0 = arith.constant 0 : i32
    %c0_i32_1 = arith.constant 0 : i32
    return %c0_i32, %c0_i32_0 : i32, i32
  }
}

</mosaic_0001>

<llo_original>
// kernel: tpu_custom_call.1
$region0: #{tpu_custom_call.1}
  #allocation0 [shape = 'u32[]', space=smem, size = 0x4, offset = 0x4, fixed_abs, tag = 'smem constant byte address 0x4 - core index']
  #allocation1 [shape = 'u32[72,128]{1,0:T(1,128)}', space=vmem, size = 0x9000, scoped, tag = 'internal scratch']
  #allocation2 [shape = 'f32[1]{0:T(128)}', space=smem, size = 0x200, scoped, tag = 'scratch operand']
  %s0 = inlined_call_operand.hbm [shape: f32[32,1024], index: 0, kind: input, shape index: {}]
  %s1 = inlined_call_operand.hbm [shape: f32[32,1024], index: 1, kind: input, shape index: {}]
  %s2 = inlined_call_operand.hbm [shape: f32[1,1], index: 2, kind: output, shape index: {}]
  %s3 = sld [smem:[#allocation0]]
  $region34: #{tpu_custom_call.1} parent=0
    _
  %s5 = ssub.s32 1, %s3
  %s6 = scalar_select 0, %s5, %s3
  $region1: #{tpu_custom_call.1} parent=0
    #allocation3 [shape = 'u8[131072]{0}', space=vmem, size = 0x20000, scoped, tag = 'input window, operand 0, single buffered']
    #allocation4 [shape = 's32[1]{0}', space=sflag, size = 0x4, scoped, tag = 'scoped memory for tpu_custom_call.1']
    #allocation5 [shape = 's32[1]{0}', space=sflag, size = 0x4, scoped, tag = 'scoped memory for tpu_custom_call.1']
    #allocation6 [shape = 'u8[131072]{0}', space=vmem, size = 0x20000, scoped, tag = 'input window, operand 1, single buffered']
    #allocation7 [shape = 's32[1]{0}', space=sflag, size = 0x4, scoped, tag = 'scoped memory for tpu_custom_call.1']
    #allocation8 [shape = 'u8[512]{0}', space=smem, size = 0x200, scoped, tag = 'output window, operand 0, single buffered']
    %7 = vsyncpa [#allocation4], 0
    %8 = vsyncpa [#allocation7], 0
    %9 = vsyncpa [#allocation5], 0
    // Predicated region
    $region2: #{tpu_custom_call.1} parent=1 // pred_check
      _
    $region3: #{tpu_custom_call.1} parent=1 // pred_check_branch
      %11 = sbr.rel (0) target = $region5
    $region4: #{tpu_custom_call.1} parent=1 // pred_region
      %13 = vsyncadd [#allocation4], 0
      %s14 = sshll.u32 %s0, 4
      %s15 = int_to_ptr.hbm [resolvable:$true] %s14
      %s16 = sshll.u32 [#allocation3], 4
      %s17 = int_to_ptr.vmem [resolvable:$true] %s16
      %22 = dma.hbm_to_vmem [thread:$0]  %s15, 4096, %s17, [#allocation4], 1024, 1024, 64
    $region5: #{tpu_custom_call.1} parent=1 // pred_fallthru
      _
    // Predicated region
    $region6: #{tpu_custom_call.1} parent=1 // pred_check
      _
    $region7: #{tpu_custom_call.1} parent=1 // pred_check_branch
      %24 = sbr.rel (0) target = $region9
    $region8: #{tpu_custom_call.1} parent=1 // pred_region
      %26 = vsyncadd [#allocation7], 0
      %s27 = sshll.u32 %s1, 4
      %s28 = int_to_ptr.hbm [resolvable:$true] %s27
      %s29 = sshll.u32 [#allocation6], 4
      %s30 = int_to_ptr.vmem [resolvable:$true] %s29
      %35 = dma.hbm_to_vmem [thread:$0]  %s28, 4096, %s30, [#allocation7], 1024, 1024, 64
    $region9: #{tpu_custom_call.1} parent=1 // pred_fallthru
      _
    // Predicated region
    $region10: #{tpu_custom_call.1} parent=1 // pred_check
      _
    $region11: #{tpu_custom_call.1} parent=1 // pred_check_branch
      %37 = sbr.rel (0) target = $region13
    $region12: #{tpu_custom_call.1} parent=1 // pred_region
      %39 = dma.done [#allocation4], 4096
    $region13: #{tpu_custom_call.1} parent=1 // pred_fallthru
      _
    // Predicated region
    $region14: #{tpu_custom_call.1} parent=1 // pred_check
      _
    $region15: #{tpu_custom_call.1} parent=1 // pred_check_branch
      %41 = sbr.rel (0) target = $region17
    $region16: #{tpu_custom_call.1} parent=1 // pred_region
      %43 = dma.done [#allocation7], 4096
    $region17: #{tpu_custom_call.1} parent=1 // pred_fallthru
      _
    %p44 = scmp.eq.s32.totalorder 0, 0
    // Predicated region
    $region18: #{tpu_custom_call.1} parent=1 // pred_check
      %p45 = pneg %p44
    $region19: #{tpu_custom_call.1} parent=1 // pred_check_branch
      %47 = sbr.rel (%p45) target = $region21
    $region20: #{tpu_custom_call.1} parent=1 // pred_region
      %s48 = scalar_lea.smem [#allocation2], 0
      %49 = sst [smem:[%s48]] 0.0
    $region21: #{tpu_custom_call.1} parent=1 // pred_fallthru
      _
    %v50 = vld [vmem:[#allocation3] sm:$0xff]
    %v51 = vld [vmem:[#allocation3 + $0x8] sm:$0xff]
    %v52 = vld [vmem:[#allocation3 + $0x10] sm:$0xff]
    %v53 = vld [vmem:[#allocation3 + $0x18] sm:$0xff]
    %v54 = vld [vmem:[#allocation3 + $0x20] sm:$0xff]
    %v55 = vld [vmem:[#allocation3 + $0x28] sm:$0xff]
    %v56 = vld [vmem:[#allocation3 + $0x30] sm:$0xff]
    %v57 = vld [vmem:[#allocation3 + $0x38] sm:$0xff]
    %v58 = vld [vmem:[#allocation3 + $0x40] sm:$0xff]
    %v59 = vld [vmem:[#allocation3 + $0x48] sm:$0xff]
    %v60 = vld [vmem:[#allocation3 + $0x50] sm:$0xff]
    %v61 = vld [vmem:[#allocation3 + $0x58] sm:$0xff]
    %v62 = vld [vmem:[#allocation3 + $0x60] sm:$0xff]
    %v63 = vld [vmem:[#allocation3 + $0x68] sm:$0xff]
    %v64 = vld [vmem:[#allocation3 + $0x70] sm:$0xff]
    %v65 = vld [vmem:[#allocation3 + $0x78] sm:$0xff]
    %v66 = vld [vmem:[#allocation3 + $0x80] sm:$0xff]
    %v67 = vld [vmem:[#allocation3 + $0x88] sm:$0xff]
    %v68 = vld [vmem:[#allocation3 + $0x90] sm:$0xff]
    %v69 = vld [vmem:[#allocation3 + $0x98] sm:$0xff]
    %v70 = vld [vmem:[#allocation3 + $0xa0] sm:$0xff]
    %v71 = vld [vmem:[#allocation3 + $0xa8] sm:$0xff]
    %v72 = vld [vmem:[#allocation3 + $0xb0] sm:$0xff]
    %v73 = vld [vmem:[#allocation3 + $0xb8] sm:$0xff]
    %v74 = vld [vmem:[#allocation3 + $0xc0] sm:$0xff]
    %v75 = vld [vmem:[#allocation3 + $0xc8] sm:$0xff]
    %v76 = vld [vmem:[#allocation3 + $0xd0] sm:$0xff]
    %v77 = vld [vmem:[#allocation3 + $0xd8] sm:$0xff]
    %v78 = vld [vmem:[#allocation3 + $0xe0] sm:$0xff]
    %v79 = vld [vmem:[#allocation3 + $0xe8] sm:$0xff]
    %v80 = vld [vmem:[#allocation3 + $0xf0] sm:$0xff]
    %v81 = vld [vmem:[#allocation3 + $0xf8] sm:$0xff]
    %v82 = vld [vmem:[#allocation6] sm:$0xff]
    %v83 = vld [vmem:[#allocation6 + $0x8] sm:$0xff]
    %v84 = vld [vmem:[#allocation6 + $0x10] sm:$0xff]
    %v85 = vld [vmem:[#allocation6 + $0x18] sm:$0xff]
    %v86 = vld [vmem:[#allocation6 + $0x20] sm:$0xff]
    %v87 = vld [vmem:[#allocation6 + $0x28] sm:$0xff]
    %v88 = vld [vmem:[#allocation6 + $0x30] sm:$0xff]
    %v89 = vld [vmem:[#allocation6 + $0x38] sm:$0xff]
    %v90 = vld [vmem:[#allocation6 + $0x40] sm:$0xff]
    %v91 = vld [vmem:[#allocation6 + $0x48] sm:$0xff]
    %v92 = vld [vmem:[#allocation6 + $0x50] sm:$0xff]
    %v93 = vld [vmem:[#allocation6 + $0x58] sm:$0xff]
    %v94 = vld [vmem:[#allocation6 + $0x60] sm:$0xff]
    %v95 = vld [vmem:[#allocation6 + $0x68] sm:$0xff]
    %v96 = vld [vmem:[#allocation6 + $0x70] sm:$0xff]
    %v97 = vld [vmem:[#allocation6 + $0x78] sm:$0xff]
    %v98 = vld [vmem:[#allocation6 + $0x80] sm:$0xff]
    %v99 = vld [vmem:[#allocation6 + $0x88] sm:$0xff]
    %v100 = vld [vmem:[#allocation6 + $0x90] sm:$0xff]
    %v101 = vld [vmem:[#allocation6 + $0x98] sm:$0xff]
    %v102 = vld [vmem:[#allocation6 + $0xa0] sm:$0xff]
    %v103 = vld [vmem:[#allocation6 + $0xa8] sm:$0xff]
    %v104 = vld [vmem:[#allocation6 + $0xb0] sm:$0xff]
    %v105 = vld [vmem:[#allocation6 + $0xb8] sm:$0xff]
    %v106 = vld [vmem:[#allocation6 + $0xc0] sm:$0xff]
    %v107 = vld [vmem:[#allocation6 + $0xc8] sm:$0xff]
    %v108 = vld [vmem:[#allocation6 + $0xd0] sm:$0xff]
    %v109 = vld [vmem:[#allocation6 + $0xd8] sm:$0xff]
    %v110 = vld [vmem:[#allocation6 + $0xe0] sm:$0xff]
    %v111 = vld [vmem:[#allocation6 + $0xe8] sm:$0xff]
    %v112 = vld [vmem:[#allocation6 + $0xf0] sm:$0xff]
    %v113 = vld [vmem:[#allocation6 + $0xf8] sm:$0xff]
    %v114 = vlog2.pop %v50
    %v115 = vmul.f32 %v114, 0.6931472
    %v116 = vlog2.pop %v51
    %v117 = vmul.f32 %v116, 0.6931472
    %v118 = vlog2.pop %v52
    %v119 = vmul.f32 %v118, 0.6931472
    %v120 = vlog2.pop %v53
    %v121 = vmul.f32 %v120, 0.6931472
    %v122 = vlog2.pop %v54
    %v123 = vmul.f32 %v122, 0.6931472
    %v124 = vlog2.pop %v55
    %v125 = vmul.f32 %v124, 0.6931472
    %v126 = vlog2.pop %v56
    %v127 = vmul.f32 %v126, 0.6931472
    %v128 = vlog2.pop %v57
    %v129 = vmul.f32 %v128, 0.6931472
    %v130 = vlog2.pop %v58
    %v131 = vmul.f32 %v130, 0.6931472
    %v132 = vlog2.pop %v59
    %v133 = vmul.f32 %v132, 0.6931472
    %v134 = vlog2.pop %v60
    %v135 = vmul.f32 %v134, 0.6931472
    %v136 = vlog2.pop %v61
    %v137 = vmul.f32 %v136, 0.6931472
    %v138 = vlog2.pop %v62
    %v139 = vmul.f32 %v138, 0.6931472
    %v140 = vlog2.pop %v63
    %v141 = vmul.f32 %v140, 0.6931472
    %v142 = vlog2.pop %v64
    %v143 = vmul.f32 %v142, 0.6931472
    %v144 = vlog2.pop %v65
    %v145 = vmul.f32 %v144, 0.6931472
    %v146 = vlog2.pop %v66
    %v147 = vmul.f32 %v146, 0.6931472
    %v148 = vlog2.pop %v67
    %v149 = vmul.f32 %v148, 0.6931472
    %v150 = vlog2.pop %v68
    %v151 = vmul.f32 %v150, 0.6931472
    %v152 = vlog2.pop %v69
    %v153 = vmul.f32 %v152, 0.6931472
    %v154 = vlog2.pop %v70
    %v155 = vmul.f32 %v154, 0.6931472
    %v156 = vlog2.pop %v71
    %v157 = vmul.f32 %v156, 0.6931472
    %v158 = vlog2.pop %v72
    %v159 = vmul.f32 %v158, 0.6931472
    %v160 = vlog2.pop %v73
    %v161 = vmul.f32 %v160, 0.6931472
    %v162 = vlog2.pop %v74
    %v163 = vmul.f32 %v162, 0.6931472
    %v164 = vlog2.pop %v75
    %v165 = vmul.f32 %v164, 0.6931472
    %v166 = vlog2.pop %v76
    %v167 = vmul.f32 %v166, 0.6931472
    %v168 = vlog2.pop %v77
    %v169 = vmul.f32 %v168, 0.6931472
    %v170 = vlog2.pop %v78
    %v171 = vmul.f32 %v170, 0.6931472
    %v172 = vlog2.pop %v79
    %v173 = vmul.f32 %v172, 0.6931472
    %v174 = vlog2.pop %v80
    %v175 = vmul.f32 %v174, 0.6931472
    %v176 = vlog2.pop %v81
    %v177 = vmul.f32 %v176, 0.6931472
    %v178 = vmax.f32 %v115, -100.0
    %v179 = vmax.f32 %v117, -100.0
    %v180 = vmax.f32 %v119, -100.0
    %v181 = vmax.f32 %v121, -100.0
    %v182 = vmax.f32 %v123, -100.0
    %v183 = vmax.f32 %v125, -100.0
    %v184 = vmax.f32 %v127, -100.0
    %v185 = vmax.f32 %v129, -100.0
    %v186 = vmax.f32 %v131, -100.0
    %v187 = vmax.f32 %v133, -100.0
    %v188 = vmax.f32 %v135, -100.0
    %v189 = vmax.f32 %v137, -100.0
    %v190 = vmax.f32 %v139, -100.0
    %v191 = vmax.f32 %v141, -100.0
    %v192 = vmax.f32 %v143, -100.0
    %v193 = vmax.f32 %v145, -100.0
    %v194 = vmax.f32 %v147, -100.0
    %v195 = vmax.f32 %v149, -100.0
    %v196 = vmax.f32 %v151, -100.0
    %v197 = vmax.f32 %v153, -100.0
    %v198 = vmax.f32 %v155, -100.0
    %v199 = vmax.f32 %v157, -100.0
    %v200 = vmax.f32 %v159, -100.0
    %v201 = vmax.f32 %v161, -100.0
    %v202 = vmax.f32 %v163, -100.0
    %v203 = vmax.f32 %v165, -100.0
    %v204 = vmax.f32 %v167, -100.0
    %v205 = vmax.f32 %v169, -100.0
    %v206 = vmax.f32 %v171, -100.0
    %v207 = vmax.f32 %v173, -100.0
    %v208 = vmax.f32 %v175, -100.0
    %v209 = vmax.f32 %v177, -100.0
    %v210 = vsub.f32 1.0, %v50
    %v211 = vsub.f32 1.0, %v51
    %v212 = vsub.f32 1.0, %v52
    %v213 = vsub.f32 1.0, %v53
    %v214 = vsub.f32 1.0, %v54
    %v215 = vsub.f32 1.0, %v55
    %v216 = vsub.f32 1.0, %v56
    %v217 = vsub.f32 1.0, %v57
    %v218 = vsub.f32 1.0, %v58
    %v219 = vsub.f32 1.0, %v59
    %v220 = vsub.f32 1.0, %v60
    %v221 = vsub.f32 1.0, %v61
    %v222 = vsub.f32 1.0, %v62
    %v223 = vsub.f32 1.0, %v63
    %v224 = vsub.f32 1.0, %v64
    %v225 = vsub.f32 1.0, %v65
    %v226 = vsub.f32 1.0, %v66
    %v227 = vsub.f32 1.0, %v67
    %v228 = vsub.f32 1.0, %v68
    %v229 = vsub.f32 1.0, %v69
    %v230 = vsub.f32 1.0, %v70
    %v231 = vsub.f32 1.0, %v71
    %v232 = vsub.f32 1.0, %v72
    %v233 = vsub.f32 1.0, %v73
    %v234 = vsub.f32 1.0, %v74
    %v235 = vsub.f32 1.0, %v75
    %v236 = vsub.f32 1.0, %v76
    %v237 = vsub.f32 1.0, %v77
    %v238 = vsub.f32 1.0, %v78
    %v239 = vsub.f32 1.0, %v79
    %v240 = vsub.f32 1.0, %v80
    %v241 = vsub.f32 1.0, %v81
    %v242 = vlog2.pop %v210
    %v243 = vmul.f32 %v242, 0.6931472
    %v244 = vlog2.pop %v211
    %v245 = vmul.f32 %v244, 0.6931472
    %v246 = vlog2.pop %v212
    %v247 = vmul.f32 %v246, 0.6931472
    %v248 = vlog2.pop %v213
    %v249 = vmul.f32 %v248, 0.6931472
    %v250 = vlog2.pop %v214
    %v251 = vmul.f32 %v250, 0.6931472
    %v252 = vlog2.pop %v215
    %v253 = vmul.f32 %v252, 0.6931472
    %v254 = vlog2.pop %v216
    %v255 = vmul.f32 %v254, 0.6931472
    %v256 = vlog2.pop %v217
    %v257 = vmul.f32 %v256, 0.6931472
    %v258 = vlog2.pop %v218
    %v259 = vmul.f32 %v258, 0.6931472
    %v260 = vlog2.pop %v219
    %v261 = vmul.f32 %v260, 0.6931472
    %v262 = vlog2.pop %v220
    %v263 = vmul.f32 %v262, 0.6931472
    %v264 = vlog2.pop %v221
    %v265 = vmul.f32 %v264, 0.6931472
    %v266 = vlog2.pop %v222
    %v267 = vmul.f32 %v266, 0.6931472
    %v268 = vlog2.pop %v223
    %v269 = vmul.f32 %v268, 0.6931472
    %v270 = vlog2.pop %v224
    %v271 = vmul.f32 %v270, 0.6931472
    %v272 = vlog2.pop %v225
    %v273 = vmul.f32 %v272, 0.6931472
    %v274 = vlog2.pop %v226
    %v275 = vmul.f32 %v274, 0.6931472
    %v276 = vlog2.pop %v227
    %v277 = vmul.f32 %v276, 0.6931472
    %v278 = vlog2.pop %v228
    %v279 = vmul.f32 %v278, 0.6931472
    %v280 = vlog2.pop %v229
    %v281 = vmul.f32 %v280, 0.6931472
    %v282 = vlog2.pop %v230
    %v283 = vmul.f32 %v282, 0.6931472
    %v284 = vlog2.pop %v231
    %v285 = vmul.f32 %v284, 0.6931472
    %v286 = vlog2.pop %v232
    %v287 = vmul.f32 %v286, 0.6931472
    %v288 = vlog2.pop %v233
    %v289 = vmul.f32 %v288, 0.6931472
    %v290 = vlog2.pop %v234
    %v291 = vmul.f32 %v290, 0.6931472
    %v292 = vlog2.pop %v235
    %v293 = vmul.f32 %v292, 0.6931472
    %v294 = vlog2.pop %v236
    %v295 = vmul.f32 %v294, 0.6931472
    %v296 = vlog2.pop %v237
    %v297 = vmul.f32 %v296, 0.6931472
    %v298 = vlog2.pop %v238
    %v299 = vmul.f32 %v298, 0.6931472
    %v300 = vlog2.pop %v239
    %v301 = vmul.f32 %v300, 0.6931472
    %v302 = vlog2.pop %v240
    %v303 = vmul.f32 %v302, 0.6931472
    %v304 = vlog2.pop %v241
    %v305 = vmul.f32 %v304, 0.6931472
    %v306 = vmax.f32 %v243, -100.0
    %v307 = vmax.f32 %v245, -100.0
    %v308 = vmax.f32 %v247, -100.0
    %v309 = vmax.f32 %v249, -100.0
    %v310 = vmax.f32 %v251, -100.0
    %v311 = vmax.f32 %v253, -100.0
    %v312 = vmax.f32 %v255, -100.0
    %v313 = vmax.f32 %v257, -100.0
    %v314 = vmax.f32 %v259, -100.0
    %v315 = vmax.f32 %v261, -100.0
    %v316 = vmax.f32 %v263, -100.0
    %v317 = vmax.f32 %v265, -100.0
    %v318 = vmax.f32 %v267, -100.0
    %v319 = vmax.f32 %v269, -100.0
    %v320 = vmax.f32 %v271, -100.0
    %v321 = vmax.f32 %v273, -100.0
    %v322 = vmax.f32 %v275, -100.0
    %v323 = vmax.f32 %v277, -100.0
    %v324 = vmax.f32 %v279, -100.0
    %v325 = vmax.f32 %v281, -100.0
    %v326 = vmax.f32 %v283, -100.0
    %v327 = vmax.f32 %v285, -100.0
    %v328 = vmax.f32 %v287, -100.0
    %v329 = vmax.f32 %v289, -100.0
    %v330 = vmax.f32 %v291, -100.0
    %v331 = vmax.f32 %v293, -100.0
    %v332 = vmax.f32 %v295, -100.0
    %v333 = vmax.f32 %v297, -100.0
    %v334 = vmax.f32 %v299, -100.0
    %v335 = vmax.f32 %v301, -100.0
    %v336 = vmax.f32 %v303, -100.0
    %v337 = vmax.f32 %v305, -100.0
    %v338 = vmul.f32 %v82, %v178
    %v339 = vmul.f32 %v83, %v179
    %v340 = vmul.f32 %v84, %v180
    %v341 = vmul.f32 %v85, %v181
    %v342 = vmul.f32 %v86, %v182
    %v343 = vmul.f32 %v87, %v183
    %v344 = vmul.f32 %v88, %v184
    %v345 = vmul.f32 %v89, %v185
    %v346 = vmul.f32 %v90, %v186
    %v347 = vmul.f32 %v91, %v187
    %v348 = vmul.f32 %v92, %v188
    %v349 = vmul.f32 %v93, %v189
    %v350 = vmul.f32 %v94, %v190
    %v351 = vmul.f32 %v95, %v191
    %v352 = vmul.f32 %v96, %v192
    %v353 = vmul.f32 %v97, %v193
    %v354 = vmul.f32 %v98, %v194
    %v355 = vmul.f32 %v99, %v195
    %v356 = vmul.f32 %v100, %v196
    %v357 = vmul.f32 %v101, %v197
    %v358 = vmul.f32 %v102, %v198
    %v359 = vmul.f32 %v103, %v199
    %v360 = vmul.f32 %v104, %v200
    %v361 = vmul.f32 %v105, %v201
    %v362 = vmul.f32 %v106, %v202
    %v363 = vmul.f32 %v107, %v203
    %v364 = vmul.f32 %v108, %v204
    %v365 = vmul.f32 %v109, %v205
    %v366 = vmul.f32 %v110, %v206
    %v367 = vmul.f32 %v111, %v207
    %v368 = vmul.f32 %v112, %v208
    %v369 = vmul.f32 %v113, %v209
    %v370 = vsub.f32 1.0, %v82
    %v371 = vsub.f32 1.0, %v83
    %v372 = vsub.f32 1.0, %v84
    %v373 = vsub.f32 1.0, %v85
    %v374 = vsub.f32 1.0, %v86
    %v375 = vsub.f32 1.0, %v87
    %v376 = vsub.f32 1.0, %v88
    %v377 = vsub.f32 1.0, %v89
    %v378 = vsub.f32 1.0, %v90
    %v379 = vsub.f32 1.0, %v91
    %v380 = vsub.f32 1.0, %v92
    %v381 = vsub.f32 1.0, %v93
    %v382 = vsub.f32 1.0, %v94
    %v383 = vsub.f32 1.0, %v95
    %v384 = vsub.f32 1.0, %v96
    %v385 = vsub.f32 1.0, %v97
    %v386 = vsub.f32 1.0, %v98
    %v387 = vsub.f32 1.0, %v99
    %v388 = vsub.f32 1.0, %v100
    %v389 = vsub.f32 1.0, %v101
    %v390 = vsub.f32 1.0, %v102
    %v391 = vsub.f32 1.0, %v103
    %v392 = vsub.f32 1.0, %v104
    %v393 = vsub.f32 1.0, %v105
    %v394 = vsub.f32 1.0, %v106
    %v395 = vsub.f32 1.0, %v107
    %v396 = vsub.f32 1.0, %v108
    %v397 = vsub.f32 1.0, %v109
    %v398 = vsub.f32 1.0, %v110
    %v399 = vsub.f32 1.0, %v111
    %v400 = vsub.f32 1.0, %v112
    %v401 = vsub.f32 1.0, %v113
    %v402 = vmul.f32 %v370, %v306
    %v403 = vmul.f32 %v371, %v307
    %v404 = vmul.f32 %v372, %v308
    %v405 = vmul.f32 %v373, %v309
    %v406 = vmul.f32 %v374, %v310
    %v407 = vmul.f32 %v375, %v311
    %v408 = vmul.f32 %v376, %v312
    %v409 = vmul.f32 %v377, %v313
    %v410 = vmul.f32 %v378, %v314
    %v411 = vmul.f32 %v379, %v315
    %v412 = vmul.f32 %v380, %v316
    %v413 = vmul.f32 %v381, %v317
    %v414 = vmul.f32 %v382, %v318
    %v415 = vmul.f32 %v383, %v319
    %v416 = vmul.f32 %v384, %v320
    %v417 = vmul.f32 %v385, %v321
    %v418 = vmul.f32 %v386, %v322
    %v419 = vmul.f32 %v387, %v323
    %v420 = vmul.f32 %v388, %v324
    %v421 = vmul.f32 %v389, %v325
    %v422 = vmul.f32 %v390, %v326
    %v423 = vmul.f32 %v391, %v327
    %v424 = vmul.f32 %v392, %v328
    %v425 = vmul.f32 %v393, %v329
    %v426 = vmul.f32 %v394, %v330
    %v427 = vmul.f32 %v395, %v331
    %v428 = vmul.f32 %v396, %v332
    %v429 = vmul.f32 %v397, %v333
    %v430 = vmul.f32 %v398, %v334
    %v431 = vmul.f32 %v399, %v335
    %v432 = vmul.f32 %v400, %v336
    %v433 = vmul.f32 %v401, %v337
    %v434 = vadd.f32 %v338, %v402
    %v435 = vadd.f32 %v339, %v403
    %v436 = vadd.f32 %v340, %v404
    %v437 = vadd.f32 %v341, %v405
    %v438 = vadd.f32 %v342, %v406
    %v439 = vadd.f32 %v343, %v407
    %v440 = vadd.f32 %v344, %v408
    %v441 = vadd.f32 %v345, %v409
    %v442 = vadd.f32 %v346, %v410
    %v443 = vadd.f32 %v347, %v411
    %v444 = vadd.f32 %v348, %v412
    %v445 = vadd.f32 %v349, %v413
    %v446 = vadd.f32 %v350, %v414
    %v447 = vadd.f32 %v351, %v415
    %v448 = vadd.f32 %v352, %v416
    %v449 = vadd.f32 %v353, %v417
    %v450 = vadd.f32 %v354, %v418
    %v451 = vadd.f32 %v355, %v419
    %v452 = vadd.f32 %v356, %v420
    %v453 = vadd.f32 %v357, %v421
    %v454 = vadd.f32 %v358, %v422
    %v455 = vadd.f32 %v359, %v423
    %v456 = vadd.f32 %v360, %v424
    %v457 = vadd.f32 %v361, %v425
    %v458 = vadd.f32 %v362, %v426
    %v459 = vadd.f32 %v363, %v427
    %v460 = vadd.f32 %v364, %v428
    %v461 = vadd.f32 %v365, %v429
    %v462 = vadd.f32 %v366, %v430
    %v463 = vadd.f32 %v367, %v431
    %v464 = vadd.f32 %v368, %v432
    %v465 = vadd.f32 %v369, %v433
    %v466 = vsub.f32 0.0, %v434
    %v467 = vsub.f32 0.0, %v435
    %v468 = vsub.f32 0.0, %v436
    %v469 = vsub.f32 0.0, %v437
    %v470 = vsub.f32 0.0, %v438
    %v471 = vsub.f32 0.0, %v439
    %v472 = vsub.f32 0.0, %v440
    %v473 = vsub.f32 0.0, %v441
    %v474 = vsub.f32 0.0, %v442
    %v475 = vsub.f32 0.0, %v443
    %v476 = vsub.f32 0.0, %v444
    %v477 = vsub.f32 0.0, %v445
    %v478 = vsub.f32 0.0, %v446
    %v479 = vsub.f32 0.0, %v447
    %v480 = vsub.f32 0.0, %v448
    %v481 = vsub.f32 0.0, %v449
    %v482 = vsub.f32 0.0, %v450
    %v483 = vsub.f32 0.0, %v451
    %v484 = vsub.f32 0.0, %v452
    %v485 = vsub.f32 0.0, %v453
    %v486 = vsub.f32 0.0, %v454
    %v487 = vsub.f32 0.0, %v455
    %v488 = vsub.f32 0.0, %v456
    %v489 = vsub.f32 0.0, %v457
    %v490 = vsub.f32 0.0, %v458
    %v491 = vsub.f32 0.0, %v459
    %v492 = vsub.f32 0.0, %v460
    %v493 = vsub.f32 0.0, %v461
    %v494 = vsub.f32 0.0, %v462
    %v495 = vsub.f32 0.0, %v463
    %v496 = vsub.f32 0.0, %v464
    %v497 = vsub.f32 0.0, %v465
    %s498 = sld [smem:[#allocation2]]
    %v499 = vadd.f32 %v466, %v467
    %v500 = vadd.f32 %v499, %v468
    %v501 = vadd.f32 %v500, %v469
    %v502 = vadd.f32 %v501, %v470
    %v503 = vadd.f32 %v502, %v471
    %v504 = vadd.f32 %v503, %v472
    %v505 = vadd.f32 %v504, %v473
    %v506 = vadd.f32 %v505, %v474
    %v507 = vadd.f32 %v506, %v475
    %v508 = vadd.f32 %v507, %v476
    %v509 = vadd.f32 %v508, %v477
    %v510 = vadd.f32 %v509, %v478
    %v511 = vadd.f32 %v510, %v479
    %v512 = vadd.f32 %v511, %v480
    %v513 = vadd.f32 %v512, %v481
    %v514 = vadd.f32 %v513, %v482
    %v515 = vadd.f32 %v514, %v483
    %v516 = vadd.f32 %v515, %v484
    %v517 = vadd.f32 %v516, %v485
    %v518 = vadd.f32 %v517, %v486
    %v519 = vadd.f32 %v518, %v487
    %v520 = vadd.f32 %v519, %v488
    %v521 = vadd.f32 %v520, %v489
    %v522 = vadd.f32 %v521, %v490
    %v523 = vadd.f32 %v522, %v491
    %v524 = vadd.f32 %v523, %v492
    %v525 = vadd.f32 %v524, %v493
    %v526 = vadd.f32 %v525, %v494
    %v527 = vadd.f32 %v526, %v495
    %v528 = vadd.f32 %v527, %v496
    %v529 = vadd.f32 %v528, %v497
    %530 = vadd.xlane.f32.xlu0 %v529
    %v531 = vpop.xlane.xlu0 %530
    %v532 = vrot.slane %v531, 4
    %v533 = vadd.f32 %v531, %v532
    %v534 = vrot.slane %v533, 2
    %v535 = vadd.f32 %v533, %v534
    %v536 = vrot.slane %v535, 1
    %v537 = vadd.f32 %v535, %v536
    %s538 = vtos %v537
    %s539 = sadd.f32 %s498, %s538
    %s540 = scalar_lea.smem [#allocation2], 0
    %541 = sst [smem:[%s540]] %s539
    // Predicated region
    $region22: #{tpu_custom_call.1} parent=1 // pred_check
      %p542 = pneg %p44
    $region23: #{tpu_custom_call.1} parent=1 // pred_check_branch
      %544 = sbr.rel (%p542) target = $region25
    $region24: #{tpu_custom_call.1} parent=1 // pred_region
      %s545 = sld [smem:[#allocation2]]
      %s546 = smul.f32 %s545, 0.00048828125
      %s547 = scalar_lea.smem [#allocation8], 0
      %548 = sst [smem:[%s547]] %s546
    $region25: #{tpu_custom_call.1} parent=1 // pred_fallthru
      _
    // Predicated region
    $region26: #{tpu_custom_call.1} parent=1 // pred_check
      _
    $region27: #{tpu_custom_call.1} parent=1 // pred_check_branch
      %550 = sbr.rel (0) target = $region29
    $region28: #{tpu_custom_call.1} parent=1 // pred_region
      %552 = vsyncadd [#allocation5], 0
      %s554 = sshll.u32 %s2, 4
      %s555 = int_to_ptr.hbm [resolvable:$true] %s554
      %557 = dma.smem_to_hbm [#allocation8], 16, %s555, [#allocation5]
    $region29: #{tpu_custom_call.1} parent=1 // pred_fallthru
      _
    // Predicated region
    $region30: #{tpu_custom_call.1} parent=1 // pred_check
      _
    $region31: #{tpu_custom_call.1} parent=1 // pred_check_branch
      %559 = sbr.rel (0) target = $region33
    $region32: #{tpu_custom_call.1} parent=1 // pred_region
      %561 = dma.done [#allocation5], 16
    $region33: #{tpu_custom_call.1} parent=1 // pred_fallthru
      _
    %562 = sfence
    %563 = vsyncpa [#allocation4], 1
    %564 = vsyncpa [#allocation7], 1
    %565 = vsyncpa [#allocation5], 1

</llo_original>
